<compile_context>
chip_gen: v7x
topology: tpu7x:2x2x1
jax: 0.10.0
libtpu: 0.0.40
codegen_flags: <defaults>
</compile_context>

<pallas_src>
import random

import jax
import jax.numpy as jnp
from jax.experimental import pallas as pl
from jax.experimental.pallas import tpu as pltpu

ROWS = 16
COLS = 256  # lane-dense (multiple of 128) last dim


def _poly_kernel(coef_ref, x_ref, o_ref):
    # coef_ref: SMEM f32[6] = [a, b, c, d, e4, e5]  (e4/e5 pre-gated on host)
    a = coef_ref[0]
    b = coef_ref[1]
    c = coef_ref[2]
    d = coef_ref[3]
    e4 = coef_ref[4]
    e5 = coef_ref[5]

    x = x_ref[...]

    # Horner's scheme: y = a + x*(b + x*(c + x*(d + x*(e4 + x*e5))))
    y = e4 + x * e5
    y = d + x * y
    y = c + x * y
    y = b + x * y
    y = a + x * y

    o_ref[...] = y


def dynamic_net_forward(x, coeffs, degree_stop):
    """Pallas-backed forward of DynamicNet.

    x:           f32[ROWS, COLS]
    coeffs:      f32[5]  -> a, b, c, d, e
    degree_stop: Python int in {4, 5, 6} (result of random.randint(4, 6)),
                 i.e. the stop of `range(4, degree_stop)` in the PyTorch
                 forward. Resolved host-side, like the original module.
    """
    rows, cols = x.shape

    zero = jnp.float32(0.0)
    # Fold the host-side dynamic control flow into the coefficient vector so
    # the kernel is a fixed-degree Horner evaluation.
    e4 = coeffs[4] if degree_stop >= 5 else zero  # include e * x^4 ?
    e5 = coeffs[4] if degree_stop >= 6 else zero  # include e * x^5 ?
    coeffs6 = jnp.stack(
        [coeffs[0], coeffs[1], coeffs[2], coeffs[3], e4, e5]
    ).astype(jnp.float32)

    return pl.pallas_call(
        _poly_kernel,
        out_shape=jax.ShapeDtypeStruct((rows, cols), x.dtype),
        in_specs=[
            pl.BlockSpec(memory_space=pltpu.MemorySpace.SMEM),   # coeffs6
            pl.BlockSpec(memory_space=pltpu.MemorySpace.VMEM),   # x (whole array)
        ],
        out_specs=pl.BlockSpec(memory_space=pltpu.MemorySpace.VMEM),
    )(coeffs6, x)


if __name__ == "__main__":
    key = jax.random.PRNGKey(0)
    k_x, k_p = jax.random.split(key)

    # Deterministic "randn" parameters: a, b, c, d, e (scalar params in module).
    coeffs = jax.random.normal(k_p, (5,), dtype=jnp.float32)

    # Input: x ~ randn. The forward is purely elementwise, so any shape with a
    # lane-dense last dim reproduces the semantics exactly.
    x = jax.random.normal(k_x, (ROWS, COLS), dtype=jnp.float32)

    # Emulate the module's Python-level dynamic control flow deterministically.
    random.seed(0)
    degree_stop = random.randint(4, 6)  # 4, 5, or 6

    y = dynamic_net_forward(x, coeffs, degree_stop)
    y = jax.block_until_ready(y)

    # Pure-JAX reference check of the exact PyTorch semantics.
    a, b, c, d, e = [coeffs[i] for i in range(5)]
    y_ref = a + b * x + c * x**2 + d * x**3
    for exp in range(4, degree_stop):
        y_ref = y_ref + e * x**exp

    assert jnp.allclose(y, y_ref, rtol=1e-5, atol=1e-5), "mismatch vs reference"
    print("KERNEL_OK")
</pallas_src>

<mosaic_0001>
module attributes {stable_mosaic.version = 11 : i64} {
  func.func @_poly_kernel(%arg0: memref<6xf32, #tpu.memory_space<smem>>, %arg1: memref<16x256xf32, #tpu.memory_space<vmem>>, %arg2: memref<16x256xf32, #tpu.memory_space<vmem>>) attributes {dimension_semantics = [], scalar_prefetch = 0 : i64, scratch_operands = 0 : i64, tpu.core_type = #tpu.core_type<tc>} {
    %c0 = arith.constant 0 : index
    %0 = memref.load %arg0[%c0] : memref<6xf32, #tpu.memory_space<smem>>
    %c1 = arith.constant 1 : index
    %1 = memref.load %arg0[%c1] : memref<6xf32, #tpu.memory_space<smem>>
    %c2 = arith.constant 2 : index
    %2 = memref.load %arg0[%c2] : memref<6xf32, #tpu.memory_space<smem>>
    %c3 = arith.constant 3 : index
    %3 = memref.load %arg0[%c3] : memref<6xf32, #tpu.memory_space<smem>>
    %c4 = arith.constant 4 : index
    %4 = memref.load %arg0[%c4] : memref<6xf32, #tpu.memory_space<smem>>
    %c5 = arith.constant 5 : index
    %5 = memref.load %arg0[%c5] : memref<6xf32, #tpu.memory_space<smem>>
    %c0_0 = arith.constant 0 : index
    %c0_1 = arith.constant 0 : index
    %6 = vector.load %arg1[%c0_0, %c0_1] : memref<16x256xf32, #tpu.memory_space<vmem>>, vector<16x256xf32>
    %7 = vector.broadcast %5 : f32 to vector<16x256xf32>
    %8 = arith.mulf %6, %7 : vector<16x256xf32>
    %9 = vector.broadcast %4 : f32 to vector<16x256xf32>
    %10 = arith.addf %9, %8 : vector<16x256xf32>
    %11 = arith.mulf %6, %10 : vector<16x256xf32>
    %12 = vector.broadcast %3 : f32 to vector<16x256xf32>
    %13 = arith.addf %12, %11 : vector<16x256xf32>
    %14 = arith.mulf %6, %13 : vector<16x256xf32>
    %15 = vector.broadcast %2 : f32 to vector<16x256xf32>
    %16 = arith.addf %15, %14 : vector<16x256xf32>
    %17 = arith.mulf %6, %16 : vector<16x256xf32>
    %18 = vector.broadcast %1 : f32 to vector<16x256xf32>
    %19 = arith.addf %18, %17 : vector<16x256xf32>
    %20 = arith.mulf %6, %19 : vector<16x256xf32>
    %21 = vector.broadcast %0 : f32 to vector<16x256xf32>
    %22 = arith.addf %21, %20 : vector<16x256xf32>
    %c0_2 = arith.constant 0 : index
    %c0_3 = arith.constant 0 : index
    %23 = vector.load %arg2[%c0_2, %c0_3] : memref<16x256xf32, #tpu.memory_space<vmem>>, vector<16x256xf32>
    tpu.vector_store %arg2[%c0_2, %c0_3], %22 {strides = array<i32>} : memref<16x256xf32, #tpu.memory_space<vmem>>, vector<16x256xf32>,
    return
  }
}

</mosaic_0001>

<llo_original>
// kernel: tpu_custom_call.1
$region0: #{tpu_custom_call.1}
  #allocation0 [shape = 'u32[]', space=smem, size = 0x4, offset = 0x4, fixed_abs, tag = 'smem constant byte address 0x4 - core index']
  #allocation1 [shape = 'u32[144,128]{1,0:T(1,128)}', space=vmem, size = 0x12000, scoped, tag = 'internal scratch']
  %s0 = inlined_call_operand.hbm [shape: f32[6], index: 0, kind: input, shape index: {}]
  %s1 = inlined_call_operand.hbm [shape: f32[16,256], index: 1, kind: input, shape index: {}]
  %s2 = inlined_call_operand.hbm [shape: f32[16,256], index: 2, kind: output, shape index: {}]
  %s3 = sld [smem:[#allocation0]]
  $region26: #{tpu_custom_call.1} parent=0
    _
  %s5 = ssub.s32 1, %s3
  %s6 = scalar_select 0, %s5, %s3
  $region1: #{tpu_custom_call.1} parent=0
    #allocation2 [shape = 'u8[512]{0}', space=smem, size = 0x200, scoped, tag = 'input window, operand 0, single buffered']
    #allocation3 [shape = 's32[1]{0}', space=sflag, size = 0x4, scoped, tag = 'scoped memory for tpu_custom_call.1']
    #allocation4 [shape = 's32[1]{0}', space=sflag, size = 0x4, scoped, tag = 'scoped memory for tpu_custom_call.1']
    #allocation5 [shape = 's32[1]{0}', space=sflag, size = 0x4, scoped, tag = 'scoped memory for tpu_custom_call.1']
    #allocation6 [shape = 'u8[16384]{0}', space=vmem, size = 0x4000, scoped, tag = 'input window, operand 1, single buffered']
    #allocation7 [shape = 'u8[16384]{0}', space=vmem, size = 0x4000, scoped, tag = 'output window, operand 0, single buffered']
    %7 = vsyncpa [#allocation5], 0
    %8 = vsyncpa [#allocation3], 0
    %9 = vsyncpa [#allocation4], 0
    // Predicated region
    $region2: #{tpu_custom_call.1} parent=1 // pred_check
      _
    $region3: #{tpu_custom_call.1} parent=1 // pred_check_branch
      %11 = sbr.rel (0) target = $region5
    $region4: #{tpu_custom_call.1} parent=1 // pred_region
      %s13 = ssub.s32 16, 16
      %14 = vsyncadd [#allocation5], %s13
      %17 = dma.hbm_to_smem %s0, 16, [#allocation2], [#allocation5]
    $region5: #{tpu_custom_call.1} parent=1 // pred_fallthru
      _
    // Predicated region
    $region6: #{tpu_custom_call.1} parent=1 // pred_check
      _
    $region7: #{tpu_custom_call.1} parent=1 // pred_check_branch
      %19 = sbr.rel (0) target = $region9
    $region8: #{tpu_custom_call.1} parent=1 // pred_region
      %s21 = ssub.s32 512, 512
      %22 = vsyncadd [#allocation3], %s21
      %s23 = sshll.u32 [#allocation6], 4
      %s24 = int_to_ptr.vmem [resolvable:$true] %s23
      %29 = dma.hbm_to_vmem [thread:$0]  %s1, 512, %s24, [#allocation3], 256, 256, 16
    $region9: #{tpu_custom_call.1} parent=1 // pred_fallthru
      _
    // Predicated region
    $region10: #{tpu_custom_call.1} parent=1 // pred_check
      _
    $region11: #{tpu_custom_call.1} parent=1 // pred_check_branch
      %31 = sbr.rel (0) target = $region13
    $region12: #{tpu_custom_call.1} parent=1 // pred_region
      %32 = dma.done [#allocation5], 16
    $region13: #{tpu_custom_call.1} parent=1 // pred_fallthru
      _
    // Predicated region
    $region14: #{tpu_custom_call.1} parent=1 // pred_check
      _
    $region15: #{tpu_custom_call.1} parent=1 // pred_check_branch
      %34 = sbr.rel (0) target = $region17
    $region16: #{tpu_custom_call.1} parent=1 // pred_region
      %35 = dma.done [#allocation3], 512
    $region17: #{tpu_custom_call.1} parent=1 // pred_fallthru
      _
    %36 = sfence
    %s37 = sld [smem:[#allocation2]]
    %s38 = sld [smem:[#allocation2 + $0x1]]
    %s39 = sld [smem:[#allocation2 + $0x2]]
    %s40 = sld [smem:[#allocation2 + $0x3]]
    %s41 = sld [smem:[#allocation2 + $0x4]]
    %s42 = sld [smem:[#allocation2 + $0x5]]
    %v43 = vld [vmem:[#allocation6] sm:$0xff]
    %v44 = vld [vmem:[#allocation6 + $0x8] sm:$0xff]
    %v45 = vld [vmem:[#allocation6 + $0x10] sm:$0xff]
    %v46 = vld [vmem:[#allocation6 + $0x18] sm:$0xff]
    %v47 = vstv %s42
    %v48 = vmul.f32 %v43, %v47
    %v49 = vmul.f32 %v44, %v47
    %v50 = vmul.f32 %v45, %v47
    %v51 = vmul.f32 %v46, %v47
    %v52 = vstv %s41
    %v53 = vadd.f32 %v52, %v48
    %v54 = vadd.f32 %v52, %v49
    %v55 = vadd.f32 %v52, %v50
    %v56 = vadd.f32 %v52, %v51
    %v57 = vmul.f32 %v43, %v53
    %v58 = vmul.f32 %v44, %v54
    %v59 = vmul.f32 %v45, %v55
    %v60 = vmul.f32 %v46, %v56
    %v61 = vstv %s40
    %v62 = vadd.f32 %v61, %v57
    %v63 = vadd.f32 %v61, %v58
    %v64 = vadd.f32 %v61, %v59
    %v65 = vadd.f32 %v61, %v60
    %v66 = vmul.f32 %v43, %v62
    %v67 = vmul.f32 %v44, %v63
    %v68 = vmul.f32 %v45, %v64
    %v69 = vmul.f32 %v46, %v65
    %v70 = vstv %s39
    %v71 = vadd.f32 %v70, %v66
    %v72 = vadd.f32 %v70, %v67
    %v73 = vadd.f32 %v70, %v68
    %v74 = vadd.f32 %v70, %v69
    %v75 = vmul.f32 %v43, %v71
    %v76 = vmul.f32 %v44, %v72
    %v77 = vmul.f32 %v45, %v73
    %v78 = vmul.f32 %v46, %v74
    %v79 = vstv %s38
    %v80 = vadd.f32 %v79, %v75
    %v81 = vadd.f32 %v79, %v76
    %v82 = vadd.f32 %v79, %v77
    %v83 = vadd.f32 %v79, %v78
    %v84 = vmul.f32 %v43, %v80
    %v85 = vmul.f32 %v44, %v81
    %v86 = vmul.f32 %v45, %v82
    %v87 = vmul.f32 %v46, %v83
    %v88 = vstv %s37
    %v89 = vadd.f32 %v88, %v84
    %v90 = vadd.f32 %v88, %v85
    %v91 = vadd.f32 %v88, %v86
    %v92 = vadd.f32 %v88, %v87
    %93 = vst [vmem:[#allocation7] sm:$0xff] %v89
    %94 = vst [vmem:[#allocation7 + $0x8] sm:$0xff] %v90
    %95 = vst [vmem:[#allocation7 + $0x10] sm:$0xff] %v91
    %96 = vst [vmem:[#allocation7 + $0x18] sm:$0xff] %v92
    // Predicated region
    $region18: #{tpu_custom_call.1} parent=1 // pred_check
      _
    $region19: #{tpu_custom_call.1} parent=1 // pred_check_branch
      %98 = sbr.rel (0) target = $region21
    $region20: #{tpu_custom_call.1} parent=1 // pred_region
      %s100 = ssub.s32 512, 512
      %101 = vsyncadd [#allocation4], %s100
      %s102 = sshll.u32 [#allocation7], 4
      %s103 = int_to_ptr.vmem [resolvable:$true] %s102
      %108 = dma.vmem_to_hbm [thread:$0]  %s103, 512, %s2, [#allocation4], 256, 256, 16
    $region21: #{tpu_custom_call.1} parent=1 // pred_fallthru
      _
    // Predicated region
    $region22: #{tpu_custom_call.1} parent=1 // pred_check
      _
    $region23: #{tpu_custom_call.1} parent=1 // pred_check_branch
      %110 = sbr.rel (0) target = $region25
    $region24: #{tpu_custom_call.1} parent=1 // pred_region
      %111 = dma.done [#allocation4], 512
    $region25: #{tpu_custom_call.1} parent=1 // pred_fallthru
      _
    %112 = vsyncpa [#allocation3], 1
    %113 = vsyncpa [#allocation4], 1
    %114 = vsyncpa [#allocation5], 1

</llo_original>
